<compile_context>
chip_gen: v7x
topology: tpu7x:2x2x1
jax: 0.10.0
libtpu: 0.0.40
codegen_flags: <defaults>
</compile_context>

<pallas_src>
import jax
import jax.numpy as jnp
from jax.experimental import pallas as pl
from jax.experimental.pallas import tpu as pltpu

TIME_WINDOW = 4
THRESH = 0.5
DECAY = 0.25

LANE = 128
MAX_ROW_TILE = 2048  # (4, 2048, 128) f32 block = 4 MiB


def _round_up(x, m):
    return (x + m - 1) // m * m


def _mem_update_kernel(x_ref, o_ref):
    # x_ref / o_ref: (TIME_WINDOW, row_tile, 128) blocks in the caller's dtype.
    # Recurrence and threshold run in f32 regardless of I/O dtype (keeps
    # borderline spikes identical to the f32 reference even for bf16 inputs).
    mem = x_ref[0].astype(jnp.float32)
    spike = mem > THRESH
    o_ref[0] = spike.astype(o_ref.dtype)
    for i in range(1, TIME_WINDOW):
        xi = x_ref[i].astype(jnp.float32)
        # mem_new = mem_old * decay * (1 - spike) + x[i]
        mem = jnp.where(spike, xi, mem * DECAY + xi)
        spike = mem > THRESH
        o_ref[i] = spike.astype(o_ref.dtype)


@jax.jit
def mem_update(x):
    """LIF membrane update over the leading time axis.

    x: (time_window, B, C, H, W) float  ->  binary spikes, same shape/dtype.
    """
    orig_shape = x.shape
    dtype = x.dtype
    T = orig_shape[0]
    assert T == TIME_WINDOW, "leading axis must be the time window"

    n = 1
    for d in orig_shape[1:]:
        n *= d

    # Second-minor alignment depends on dtype packing: 8 (f32), 16 (bf16), 32 (i8).
    itemsize = jnp.dtype(dtype).itemsize
    sublane = max(8, 32 // itemsize)

    # View per-timestep elements as (rows, 128); pad rows only up to a sublane
    # multiple (NOT up to a full row tile) — partial final blocks are masked.
    rows = pl.cdiv(n, LANE)
    rows_p = _round_up(rows, sublane)
    n_p = rows_p * LANE

    xf = x.reshape(T, n)
    if n_p != n:
        xf = jnp.pad(xf, ((0, 0), (0, n_p - n)))
    x3 = xf.reshape(T, rows_p, LANE)

    # Row tile: as big as possible (amortize ~0.35 us/step overhead) but keep
    # >= 2 grid blocks so the "parallel" axis feeds both v7x TensorCores.
    row_tile = min(MAX_ROW_TILE,
                   max(sublane, _round_up(pl.cdiv(rows_p, 2), sublane)))
    grid = pl.cdiv(rows_p, row_tile)

    # in + out blocks, double-buffered, in the I/O dtype, plus f32 temporaries
    # and headroom; capped well under v7x's 64 MiB/TC physical VMEM.
    blk_bytes = T * row_tile * LANE * itemsize
    vmem_bytes = 4 * blk_bytes + 8 * row_tile * LANE * 4 + (4 << 20)
    vmem_bytes = int(min(vmem_bytes, 48 << 20))

    out = pl.pallas_call(
        _mem_update_kernel,
        out_shape=jax.ShapeDtypeStruct((T, rows_p, LANE), dtype),
        grid_spec=pltpu.PrefetchScalarGridSpec(
            num_scalar_prefetch=0,
            grid=(grid,),
            in_specs=[pl.BlockSpec((T, row_tile, LANE), lambda i: (0, i, 0))],
            out_specs=pl.BlockSpec((T, row_tile, LANE), lambda i: (0, i, 0)),
        ),
        compiler_params=pltpu.CompilerParams(
            dimension_semantics=("parallel",),
            vmem_limit_bytes=vmem_bytes),
    )(x3)

    out = out.reshape(T, n_p)
    if n_p != n:
        out = out[:, :n]
    return out.reshape(orig_shape)


def _mem_update_ref(x):
    """Pure-JAX reference matching the PyTorch mem_update forward (f32 math)."""
    xf = x.astype(jnp.float32)
    mem = xf[0]
    spike = (mem > THRESH).astype(jnp.float32)
    outs = [spike]
    for i in range(1, TIME_WINDOW):
        mem = mem * DECAY * (1.0 - spike) + xf[i]
        spike = (mem > THRESH).astype(jnp.float32)
        outs.append(spike)
    return jnp.stack(outs, axis=0).astype(x.dtype)


if __name__ == "__main__":
    key = jax.random.PRNGKey(0)
    # (time_window, batch, channels, H, W) — layout the PyTorch module sees.
    x = jax.random.normal(key, (TIME_WINDOW, 2, 4, 16, 16), jnp.float32)

    spikes = mem_update(x)
    jax.block_until_ready(spikes)

    assert spikes.shape == x.shape and spikes.dtype == x.dtype
    ref = _mem_update_ref(x)
    assert bool(jnp.all((spikes == 0.0) | (spikes == 1.0)))
    assert bool(jnp.all(spikes == ref))

    # Non-lane-aligned shape exercises the minimal-pad + masked partial block path.
    x2 = jax.random.normal(jax.random.PRNGKey(1),
                           (TIME_WINDOW, 1, 3, 5, 7), jnp.float32)
    s2 = mem_update(x2)
    jax.block_until_ready(s2)
    assert bool(jnp.all(s2 == _mem_update_ref(x2)))

    # Native bf16 I/O path (recurrence still in f32; spikes exact in bf16).
    xb = x.astype(jnp.bfloat16)
    sb = mem_update(xb)
    jax.block_until_ready(sb)
    assert sb.dtype == jnp.bfloat16
    assert bool(jnp.all(sb.astype(jnp.float32)
                        == _mem_update_ref(xb).astype(jnp.float32)))

    print("KERNEL_OK")
</pallas_src>

<mosaic_0001>
module attributes {stable_mosaic.version = 11 : i64} {
  func.func @_mem_update_kernel(%arg0: i32, %arg1: memref<4x8x128xf32, #tpu.memory_space<vmem>>, %arg2: memref<4x8x128xf32, #tpu.memory_space<vmem>>) attributes {dimension_semantics = [#tpu.dimension_semantics<parallel>], iteration_bounds = array<i64: 2>, scalar_prefetch = 0 : i64, scratch_operands = 0 : i64, tpu.core_type = #tpu.core_type<tc>, window_params = [{transform_indices = @transform_0, window_bounds = array<i64: 4, 8, 128>}, {transform_indices = @transform_1, window_bounds = array<i64: 4, 8, 128>}]} {
    %c0 = arith.constant 0 : index
    %c0_0 = arith.constant 0 : index
    %c0_1 = arith.constant 0 : index
    %0 = vector.load %arg1[%c0, %c0_0, %c0_1] : memref<4x8x128xf32, #tpu.memory_space<vmem>>, vector<1x8x128xf32>
    %1 = vector.shape_cast %0 : vector<1x8x128xf32> to vector<8x128xf32>
    %cst = arith.constant 5.000000e-01 : f32
    %2 = vector.broadcast %cst : f32 to vector<8x128xf32>
    %3 = arith.cmpf ogt, %1, %2 : vector<8x128xf32>
    %4 = arith.extui %3 : vector<8x128xi1> to vector<8x128xi32>
    %5 = arith.sitofp %4 : vector<8x128xi32> to vector<8x128xf32>
    %c0_2 = arith.constant 0 : index
    %c0_3 = arith.constant 0 : index
    %c0_4 = arith.constant 0 : index
    %6 = vector.load %arg2[%c0_2, %c0_3, %c0_4] : memref<4x8x128xf32, #tpu.memory_space<vmem>>, vector<1x8x128xf32>
    %7 = vector.shape_cast %6 : vector<1x8x128xf32> to vector<8x128xf32>
    %8 = vector.shape_cast %5 : vector<8x128xf32> to vector<1x8x128xf32>
    tpu.vector_store %arg2[%c0_2, %c0_3, %c0_4], %8 {strides = array<i32>} : memref<4x8x128xf32, #tpu.memory_space<vmem>>, vector<1x8x128xf32>,
    %c1 = arith.constant 1 : index
    %c0_5 = arith.constant 0 : index
    %c0_6 = arith.constant 0 : index
    %9 = vector.load %arg1[%c1, %c0_5, %c0_6] : memref<4x8x128xf32, #tpu.memory_space<vmem>>, vector<1x8x128xf32>
    %10 = vector.shape_cast %9 : vector<1x8x128xf32> to vector<8x128xf32>
    %cst_7 = arith.constant 2.500000e-01 : f32
    %11 = vector.broadcast %cst_7 : f32 to vector<8x128xf32>
    %12 = arith.mulf %1, %11 : vector<8x128xf32>
    %13 = arith.addf %12, %10 : vector<8x128xf32>
    %14 = arith.select %3, %10, %13 : vector<8x128xi1>, vector<8x128xf32>
    %cst_8 = arith.constant 5.000000e-01 : f32
    %15 = vector.broadcast %cst_8 : f32 to vector<8x128xf32>
    %16 = arith.cmpf ogt, %14, %15 : vector<8x128xf32>
    %17 = arith.extui %16 : vector<8x128xi1> to vector<8x128xi32>
    %18 = arith.sitofp %17 : vector<8x128xi32> to vector<8x128xf32>
    %c1_9 = arith.constant 1 : index
    %c0_10 = arith.constant 0 : index
    %c0_11 = arith.constant 0 : index
    %19 = vector.load %arg2[%c1_9, %c0_10, %c0_11] : memref<4x8x128xf32, #tpu.memory_space<vmem>>, vector<1x8x128xf32>
    %20 = vector.shape_cast %19 : vector<1x8x128xf32> to vector<8x128xf32>
    %21 = vector.shape_cast %18 : vector<8x128xf32> to vector<1x8x128xf32>
    tpu.vector_store %arg2[%c1_9, %c0_10, %c0_11], %21 {strides = array<i32>} : memref<4x8x128xf32, #tpu.memory_space<vmem>>, vector<1x8x128xf32>,
    %c2 = arith.constant 2 : index
    %c0_12 = arith.constant 0 : index
    %c0_13 = arith.constant 0 : index
    %22 = vector.load %arg1[%c2, %c0_12, %c0_13] : memref<4x8x128xf32, #tpu.memory_space<vmem>>, vector<1x8x128xf32>
    %23 = vector.shape_cast %22 : vector<1x8x128xf32> to vector<8x128xf32>
    %cst_14 = arith.constant 2.500000e-01 : f32
    %24 = vector.broadcast %cst_14 : f32 to vector<8x128xf32>
    %25 = arith.mulf %14, %24 : vector<8x128xf32>
    %26 = arith.addf %25, %23 : vector<8x128xf32>
    %27 = arith.select %16, %23, %26 : vector<8x128xi1>, vector<8x128xf32>
    %cst_15 = arith.constant 5.000000e-01 : f32
    %28 = vector.broadcast %cst_15 : f32 to vector<8x128xf32>
    %29 = arith.cmpf ogt, %27, %28 : vector<8x128xf32>
    %30 = arith.extui %29 : vector<8x128xi1> to vector<8x128xi32>
    %31 = arith.sitofp %30 : vector<8x128xi32> to vector<8x128xf32>
    %c2_16 = arith.constant 2 : index
    %c0_17 = arith.constant 0 : index
    %c0_18 = arith.constant 0 : index
    %32 = vector.load %arg2[%c2_16, %c0_17, %c0_18] : memref<4x8x128xf32, #tpu.memory_space<vmem>>, vector<1x8x128xf32>
    %33 = vector.shape_cast %32 : vector<1x8x128xf32> to vector<8x128xf32>
    %34 = vector.shape_cast %31 : vector<8x128xf32> to vector<1x8x128xf32>
    tpu.vector_store %arg2[%c2_16, %c0_17, %c0_18], %34 {strides = array<i32>} : memref<4x8x128xf32, #tpu.memory_space<vmem>>, vector<1x8x128xf32>,
    %c3 = arith.constant 3 : index
    %c0_19 = arith.constant 0 : index
    %c0_20 = arith.constant 0 : index
    %35 = vector.load %arg1[%c3, %c0_19, %c0_20] : memref<4x8x128xf32, #tpu.memory_space<vmem>>, vector<1x8x128xf32>
    %36 = vector.shape_cast %35 : vector<1x8x128xf32> to vector<8x128xf32>
    %cst_21 = arith.constant 2.500000e-01 : f32
    %37 = vector.broadcast %cst_21 : f32 to vector<8x128xf32>
    %38 = arith.mulf %27, %37 : vector<8x128xf32>
    %39 = arith.addf %38, %36 : vector<8x128xf32>
    %40 = arith.select %29, %36, %39 : vector<8x128xi1>, vector<8x128xf32>
    %cst_22 = arith.constant 5.000000e-01 : f32
    %41 = vector.broadcast %cst_22 : f32 to vector<8x128xf32>
    %42 = arith.cmpf ogt, %40, %41 : vector<8x128xf32>
    %43 = arith.extui %42 : vector<8x128xi1> to vector<8x128xi32>
    %44 = arith.sitofp %43 : vector<8x128xi32> to vector<8x128xf32>
    %c3_23 = arith.constant 3 : index
    %c0_24 = arith.constant 0 : index
    %c0_25 = arith.constant 0 : index
    %45 = vector.load %arg2[%c3_23, %c0_24, %c0_25] : memref<4x8x128xf32, #tpu.memory_space<vmem>>, vector<1x8x128xf32>
    %46 = vector.shape_cast %45 : vector<1x8x128xf32> to vector<8x128xf32>
    %47 = vector.shape_cast %44 : vector<8x128xf32> to vector<1x8x128xf32>
    tpu.vector_store %arg2[%c3_23, %c0_24, %c0_25], %47 {strides = array<i32>} : memref<4x8x128xf32, #tpu.memory_space<vmem>>, vector<1x8x128xf32>,
    return
  }
  func.func @transform_0(%arg0: i32) -> (i32, i32, i32) {
    %c0_i32 = arith.constant 0 : i32
    %c0_i32_0 = arith.constant 0 : i32
    %c0_i32_1 = arith.constant 0 : i32
    return %c0_i32, %arg0, %c0_i32_0 : i32, i32, i32
  }
  func.func @transform_1(%arg0: i32) -> (i32, i32, i32) {
    %c0_i32 = arith.constant 0 : i32
    %c0_i32_0 = arith.constant 0 : i32
    %c0_i32_1 = arith.constant 0 : i32
    return %c0_i32, %arg0, %c0_i32_0 : i32, i32, i32
  }
}

</mosaic_0001>

<llo_original>
// kernel: mem_update.1
$region0: #{mem_update.1}
  #allocation0 [shape = 'u32[]', space=smem, size = 0x4, offset = 0x4, fixed_abs, tag = 'smem constant byte address 0x4 - core index']
  #allocation1 [shape = 'u32[144,128]{1,0:T(1,128)}', space=vmem, size = 0x12000, scoped, tag = 'internal scratch']
  %s0 = inlined_call_operand.vmem [shape: f32[4,16,128], index: 0, kind: input, shape index: {}]
  %s1 = inlined_call_operand.vmem [shape: f32[4,16,128], index: 1, kind: output, shape index: {}]
  %s2 = sld [smem:[#allocation0]]
  $region109: #{mem_update.1} parent=0
    _
  %s4 = ssub.s32 1, %s2
  %s5 = scalar_select 0, %s4, %s2
  $region1: #{mem_update.1} parent=0
    #allocation2 [shape = 'u8[32768]{0}', space=vmem, size = 0x8000, scoped, tag = 'input window, operand 0']
    #allocation3 [shape = 'u8[32768]{0}', space=vmem, size = 0x8000, scoped, tag = 'output window, operand 0']
    loop: start=0, step=1, limit=4
    $region2: #{mem_update.1} parent=1 // loop_pre_header
      _
    $region3: #{mem_update.1} parent=1 // loop_header
      %s7 = sphi 0, %s11
      %p8 = scmp.ge.s32.totalorder %s7, 4
      %s17 = sphi 0, %s19
      %s20 = sphi 0, %s17
      %s21 = sphi 0, %s20
      %s37 = sphi 0, %s21
      %s43 = sphi 0, %s45
      %s46 = sphi 0, %s43
      %s47 = sphi 0, %s46
      %s63 = sphi 0, %s47
    $region4: #{mem_update.1} parent=1 // loop_header_branch
      %10 = sbr.rel (%p8) target = $region8
    $region5: #{mem_update.1} parent=1 // loop_body
      %s12 = ssub.s32 %s7, 1
      %s13 = ssub.s32 %s7, 2
      %s14 = sadd.s32 %s7, 1
      %s15 = ssub.s32 %s7, %s14
      %p16 = scmp.eq.s32.totalorder %s15, 0
      %s18 = sadd.s32 %s17, 1
      %s19 = scalar_select %p16, %s17, %s18
      %p22 = pneg %p16
      %p23 = scmp.eq.s32.totalorder %s7, 1
      %p24 = por %p22, %p23
      %p25 = scmp.ne.s32.totalorder %s17, %s20
      %p26 = scmp.eq.s32.totalorder %s7, 0
      %p27 = por %p25, %p26
      %p28 = scmp.ne.s32.totalorder %s17, %s20
      %p29 = scmp.eq.s32.totalorder %s12, 1
      %p30 = por %p28, %p29
      %p31 = scmp.ne.s32.totalorder %s20, %s21
      %p32 = scmp.eq.s32.totalorder %s12, 0
      %p33 = por %p31, %p32
      %p34 = scmp.ne.s32.totalorder %s20, %s21
      %p35 = scmp.eq.s32.totalorder %s13, 1
      %p36 = por %p34, %p35
      %p38 = scmp.ne.s32.totalorder %s21, %s37
      %p39 = scmp.eq.s32.totalorder %s13, 0
      %p40 = por %p38, %p39
      %s41 = ssub.s32 %s7, %s14
      %p42 = scmp.eq.s32.totalorder %s41, 0
      %s44 = sadd.s32 %s43, 1
      %s45 = scalar_select %p42, %s43, %s44
      %p48 = pneg %p42
      %p49 = scmp.eq.s32.totalorder %s7, 1
      %p50 = por %p48, %p49
      %p51 = scmp.ne.s32.totalorder %s43, %s46
      %p52 = scmp.eq.s32.totalorder %s7, 0
      %p53 = por %p51, %p52
      %p54 = scmp.ne.s32.totalorder %s43, %s46
      %p55 = scmp.eq.s32.totalorder %s12, 1
      %p56 = por %p54, %p55
      %p57 = scmp.ne.s32.totalorder %s46, %s47
      %p58 = scmp.eq.s32.totalorder %s12, 0
      %p59 = por %p57, %p58
      %p60 = scmp.ne.s32.totalorder %s46, %s47
      %p61 = scmp.eq.s32.totalorder %s13, 1
      %p62 = por %p60, %p61
      %p64 = scmp.ne.s32.totalorder %s47, %s63
      %p65 = scmp.eq.s32.totalorder %s13, 0
      %p66 = por %p64, %p65
      %p67 = scmp.le.s32.totalorder 1, %s7
      %p68 = scmp.lt.s32.totalorder %s7, 3
      %p69 = pnand %p67, %p68
      %p70 = pneg %p69
      // Predicated region
      $region9: #{mem_update.1} parent=5 // pred_check
        _
      $region10: #{mem_update.1} parent=5 // pred_check_branch
        %72 = sbr.rel (%p69) target = $region12
      $region11: #{mem_update.1} parent=5 // pred_region
        %s73 = ssub.s32 %s7, 1
      $region12: #{mem_update.1} parent=5 // pred_fallthru
        _
      %p74 = scmp.lt.s32.totalorder %s7, 2
      // Predicated region
      $region13: #{mem_update.1} parent=5 // pred_check
        %p75 = pneg %p74
      $region14: #{mem_update.1} parent=5 // pred_check_branch
        %77 = sbr.rel (%p75) target = $region16
      $region15: #{mem_update.1} parent=5 // pred_region
        // Predicated region
        $region17: #{mem_update.1} parent=15 // pred_check
          %p78 = pneg %p27
        $region18: #{mem_update.1} parent=15 // pred_check_branch
          %80 = sbr.rel (%p78) target = $region20
        $region19: #{mem_update.1} parent=15 // pred_region
          %s81 = sand.u32 %s17, 1
          %s82 = sand.u32 %s17, 1
          %s83 = smul.addr %s82, 32
          %s84 = scalar_lea.vmem [#allocation2], %s83
          %s85 = smul.addr %s7, 8
          %s86 = scalar_lea.vmem %s0, %s85
          // Predicated region
          $region21: #{mem_update.1} parent=19 // pred_check
            _
          $region22: #{mem_update.1} parent=19 // pred_check_branch
            %88 = sbr.rel (0) target = $region24
          $region23: #{mem_update.1} parent=19 // pred_region
            // Predicated region
            $region25: #{mem_update.1} parent=23 // pred_check
              _
            $region26: #{mem_update.1} parent=23 // pred_check_branch
              %90 = sbr.rel (0) target = $region28
            $region27: #{mem_update.1} parent=23 // pred_region
              // Predicated region
              $region40: #{mem_update.1} parent=27 // pred_check
                _
              $region41: #{mem_update.1} parent=27 // pred_check_branch
                %111 = sbr.rel (0) target = $region43
              $region42: #{mem_update.1} parent=27 // pred_region
                loop: start=0, step=1, limit=1
                $region44: #{mem_update.1} parent=42 // loop_pre_header
                  _
                $region45: #{mem_update.1} parent=42 // loop_header
                  %s113 = sphi 0, %s117
                  %p114 = scmp.ge.s32.totalorder %s113, 1
                  %s118 = sphi %s86, %s86
                  %s119 = sphi %s84, %s84
                $region46: #{mem_update.1} parent=42 // loop_header_branch
                  %116 = sbr.rel (%p114) target = $region50
                $region47: #{mem_update.1} parent=42 // loop_body
                  %v120 = vld [vmem:[%s118] sm:$0xff]
                  %121 = vst [vmem:[%s119] sm:$0xff] %v120
                  %v122 = vld [vmem:[%s118 + $0x10] sm:$0xff]
                  %123 = vst [vmem:[%s119 + $0x8] sm:$0xff] %v122
                  %v124 = vld [vmem:[%s118 + $0x20] sm:$0xff]
                  %125 = vst [vmem:[%s119 + $0x10] sm:$0xff] %v124
                  %v126 = vld [vmem:[%s118 + $0x30] sm:$0xff]
                  %127 = vst [vmem:[%s119 + $0x18] sm:$0xff] %v126
                $region48: #{mem_update.1} parent=42 // loop_footer
                  %s117 = sadd.s32 1, %s113
                $region49: #{mem_update.1} parent=42 // loop_footer_branch
                  %112 = sbr.rel target = $region45
                $region50: #{mem_update.1} parent=42 // loop_exit
                  _
              $region43: #{mem_update.1} parent=27 // pred_fallthru
                _
              // Predicated region
              $region51: #{mem_update.1} parent=27 // pred_check
                _
              $region52: #{mem_update.1} parent=27 // pred_check_branch
                %129 = sbr.rel target = $region54
              $region53: #{mem_update.1} parent=27 // pred_region
                _
              $region54: #{mem_update.1} parent=27 // pred_fallthru
                _
            $region28: #{mem_update.1} parent=23 // pred_fallthru
              _
            // Predicated region
            $region29: #{mem_update.1} parent=23 // pred_check
              _
            $region30: #{mem_update.1} parent=23 // pred_check_branch
              %92 = sbr.rel target = $region32
            $region31: #{mem_update.1} parent=23 // pred_region
              loop: start=0, step=1, limit=1
              $region33: #{mem_update.1} parent=31 // loop_pre_header
                _
              $region34: #{mem_update.1} parent=31 // loop_header
                %s95 = sphi 0, %s99
                %p96 = scmp.ge.s32.totalorder %s95, 1
                %s100 = sphi %s86, %s86
                %s101 = sphi %s84, %s84
              $region35: #{mem_update.1} parent=31 // loop_header_branch
                %98 = sbr.rel (%p96) target = $region39
              $region36: #{mem_update.1} parent=31 // loop_body
                %v102 = vld [vmem:[%s100] sm:$0xff]
                %103 = vst [vmem:[%s101] sm:$0xff] %v102
                %v104 = vld [vmem:[%s100 + $0x10] sm:$0xff]
                %105 = vst [vmem:[%s101 + $0x8] sm:$0xff] %v104
                %v106 = vld [vmem:[%s100 + $0x20] sm:$0xff]
                %107 = vst [vmem:[%s101 + $0x10] sm:$0xff] %v106
                %v108 = vld [vmem:[%s100 + $0x30] sm:$0xff]
                %109 = vst [vmem:[%s101 + $0x18] sm:$0xff] %v108
              $region37: #{mem_update.1} parent=31 // loop_footer
                %s99 = sadd.s32 1, %s95
              $region38: #{mem_update.1} parent=31 // loop_footer_branch
                %94 = sbr.rel target = $region34
              $region39: #{mem_update.1} parent=31 // loop_exit
                _
            $region32: #{mem_update.1} parent=23 // pred_fallthru
              _
          $region24: #{mem_update.1} parent=19 // pred_fallthru
            _
          %130 = vnop
        $region20: #{mem_update.1} parent=15 // pred_fallthru
          _
      $region16: #{mem_update.1} parent=5 // pred_fallthru
        _
      %p131 = scmp.le.s32.totalorder 1, %s7
      %p132 = scmp.lt.s32.totalorder %s7, 3
      %p133 = pnand %p131, %p132
      %p134 = pneg %p133
      // Predicated region
      $region55: #{mem_update.1} parent=5 // pred_check
        _
      $region56: #{mem_update.1} parent=5 // pred_check_branch
        %136 = sbr.rel (%p133) target = $region58
      $region57: #{mem_update.1} parent=5 // pred_region
        %s137 = ssub.s32 %s7, 1
        %s138 = sand.u32 %s20, 1
        %s139 = sand.u32 %s20, 1
        %s140 = smul.addr %s139, 32
        %s141 = scalar_lea.vmem [#allocation2], %s140
        // Predicated region
        $region59: #{mem_update.1} parent=57 // pred_check
          %p142 = pneg %p33
        $region60: #{mem_update.1} parent=57 // pred_check_branch
          %144 = sbr.rel (%p142) target = $region62
        $region61: #{mem_update.1} parent=57 // pred_region
          _
        $region62: #{mem_update.1} parent=57 // pred_fallthru
          _
        %s145 = sand.u32 %s20, 1
        %s146 = sand.u32 %s20, 1
        %s147 = smul.addr %s146, 32
        %s148 = scalar_lea.vmem [#allocation2], %s147
        %p149 = pneg %p33
        %p150 = pneg %p30
        %p151 = pneg %p59
        %p152 = pneg %p56
        %s153 = sand.u32 %s46, 1
        %s154 = sand.u32 %s46, 1
        %s155 = smul.addr %s154, 32
        %s156 = scalar_lea.vmem [#allocation3], %s155
        %v157 = vld [vmem:[%s141] sm:$0xff]
        %vm158 = vcmp.gt.f32.partialorder %v157, 0.5
        %v159 = vsel %vm158, 1, 0
        %v160 = vcvt.s32.f32 %v159
        %161 = vst [vmem:[%s156] sm:$0xff] %v160
        %s162 = scalar_lea.vmem %s141, 8 [#allocation2]
        %v163 = vld [vmem:[%s162] sm:$0xff]
        %v164 = vmul.f32 %v157, 0.25
        %v165 = vadd.f32 %v164, %v163
        %v166 = vsel %vm158, %v163, %v165
        %vm167 = vcmp.gt.f32.partialorder %v166, 0.5
        %v168 = vsel %vm167, 1, 0
        %v169 = vcvt.s32.f32 %v168
        %s170 = scalar_lea.vmem %s156, 8 [#allocation3]
        %171 = vst [vmem:[%s170] sm:$0xff] %v169
        %s172 = scalar_lea.vmem %s141, 16 [#allocation2]
        %v173 = vld [vmem:[%s172] sm:$0xff]
        %v174 = vmul.f32 %v166, 0.25
        %v175 = vadd.f32 %v174, %v173
        %v176 = vsel %vm167, %v173, %v175
        %vm177 = vcmp.gt.f32.partialorder %v176, 0.5
        %v178 = vsel %vm177, 1, 0
        %v179 = vcvt.s32.f32 %v178
        %s180 = scalar_lea.vmem %s156, 16 [#allocation3]
        %181 = vst [vmem:[%s180] sm:$0xff] %v179
        %s182 = scalar_lea.vmem %s141, 24 [#allocation2]
        %v183 = vld [vmem:[%s182] sm:$0xff]
        %v184 = vmul.f32 %v176, 0.25
        %v185 = vadd.f32 %v184, %v183
        %v186 = vsel %vm177, %v183, %v185
        %vm187 = vcmp.gt.f32.partialorder %v186, 0.5
        %v188 = vsel %vm187, 1, 0
        %v189 = vcvt.s32.f32 %v188
        %s190 = scalar_lea.vmem %s156, 24 [#allocation3]
        %191 = vst [vmem:[%s190] sm:$0xff] %v189
        %s192 = sand.u32 %s46, 1
        %s193 = sand.u32 %s46, 1
        %s194 = smul.addr %s193, 32
        %s195 = scalar_lea.vmem [#allocation3], %s194
        // Predicated region
        $region63: #{mem_update.1} parent=57 // pred_check
          %p196 = pneg %p56
        $region64: #{mem_update.1} parent=57 // pred_check_branch
          %198 = sbr.rel (%p196) target = $region66
        $region65: #{mem_update.1} parent=57 // pred_region
          %s199 = smul.addr %s12, 8
          %s200 = scalar_lea.vmem %s1, %s199
          // Predicated region
          $region67: #{mem_update.1} parent=65 // pred_check
            _
          $region68: #{mem_update.1} parent=65 // pred_check_branch
            %202 = sbr.rel (0) target = $region70
          $region69: #{mem_update.1} parent=65 // pred_region
            // Predicated region
            $region71: #{mem_update.1} parent=69 // pred_check
              _
            $region72: #{mem_update.1} parent=69 // pred_check_branch
              %204 = sbr.rel (0) target = $region74
            $region73: #{mem_update.1} parent=69 // pred_region
              // Predicated region
              $region86: #{mem_update.1} parent=73 // pred_check
                _
              $region87: #{mem_update.1} parent=73 // pred_check_branch
                %225 = sbr.rel (0) target = $region89
              $region88: #{mem_update.1} parent=73 // pred_region
                loop: start=0, step=1, limit=1
                $region90: #{mem_update.1} parent=88 // loop_pre_header
                  _
                $region91: #{mem_update.1} parent=88 // loop_header
                  %s227 = sphi 0, %s231
                  %p228 = scmp.ge.s32.totalorder %s227, 1
                  %s232 = sphi %s195, %s195
                  %s233 = sphi %s200, %s200
                $region92: #{mem_update.1} parent=88 // loop_header_branch
                  %230 = sbr.rel (%p228) target = $region96
                $region93: #{mem_update.1} parent=88 // loop_body
                  %v234 = vld [vmem:[%s232] sm:$0xff]
                  %235 = vst [vmem:[%s233] sm:$0xff] %v234
                  %v236 = vld [vmem:[%s232 + $0x8] sm:$0xff]
                  %237 = vst [vmem:[%s233 + $0x10] sm:$0xff] %v236
                  %v238 = vld [vmem:[%s232 + $0x10] sm:$0xff]
                  %239 = vst [vmem:[%s233 + $0x20] sm:$0xff] %v238
                  %v240 = vld [vmem:[%s232 + $0x18] sm:$0xff]
                  %241 = vst [vmem:[%s233 + $0x30] sm:$0xff] %v240
                $region94: #{mem_update.1} parent=88 // loop_footer
                  %s231 = sadd.s32 1, %s227
                $region95: #{mem_update.1} parent=88 // loop_footer_branch
                  %226 = sbr.rel target = $region91
                $region96: #{mem_update.1} parent=88 // loop_exit
                  _
              $region89: #{mem_update.1} parent=73 // pred_fallthru
                _
              // Predicated region
              $region97: #{mem_update.1} parent=73 // pred_check
                _
              $region98: #{mem_update.1} parent=73 // pred_check_branch
                %243 = sbr.rel target = $region100
              $region99: #{mem_update.1} parent=73 // pred_region
                _
              $region100: #{mem_update.1} parent=73 // pred_fallthru
                _
            $region74: #{mem_update.1} parent=69 // pred_fallthru
              _
            // Predicated region
            $region75: #{mem_update.1} parent=69 // pred_check
              _
            $region76: #{mem_update.1} parent=69 // pred_check_branch
              %206 = sbr.rel target = $region78
            $region77: #{mem_update.1} parent=69 // pred_region
              loop: start=0, step=1, limit=1
              $region79: #{mem_update.1} parent=77 // loop_pre_header
                _
              $region80: #{mem_update.1} parent=77 // loop_header
                %s209 = sphi 0, %s213
                %p210 = scmp.ge.s32.totalorder %s209, 1
                %s214 = sphi %s195, %s195
                %s215 = sphi %s200, %s200
              $region81: #{mem_update.1} parent=77 // loop_header_branch
                %212 = sbr.rel (%p210) target = $region85
              $region82: #{mem_update.1} parent=77 // loop_body
                %v216 = vld [vmem:[%s214] sm:$0xff]
                %217 = vst [vmem:[%s215] sm:$0xff] %v216
                %v218 = vld [vmem:[%s214 + $0x8] sm:$0xff]
                %219 = vst [vmem:[%s215 + $0x10] sm:$0xff] %v218
                %v220 = vld [vmem:[%s214 + $0x10] sm:$0xff]
                %221 = vst [vmem:[%s215 + $0x20] sm:$0xff] %v220
                %v222 = vld [vmem:[%s214 + $0x18] sm:$0xff]
                %223 = vst [vmem:[%s215 + $0x30] sm:$0xff] %v222
              $region83: #{mem_update.1} parent=77 // loop_footer
                %s213 = sadd.s32 1, %s209
              $region84: #{mem_update.1} parent=77 // loop_footer_branch
                %208 = sbr.rel target = $region80
              $region85: #{mem_update.1} parent=77 // loop_exit
                _
            $region78: #{mem_update.1} parent=69 // pred_fallthru
              _
          $region70: #{mem_update.1} parent=65 // pred_fallthru
            _
          %244 = vnop
        $region66: #{mem_update.1} parent=57 // pred_fallthru
          _
      $region58: #{mem_update.1} parent=5 // pred_fallthru
        _
      %p245 = scmp.le.s32.totalorder 2, %s7
      // Predicated region
      $region101: #{mem_update.1} parent=5 // pred_check
        %p246 = pneg %p245
      $region102: #{mem_update.1} parent=5 // pred_check_branch
        %248 = sbr.rel (%p246) target = $region104
      $region103: #{mem_update.1} parent=5 // pred_region
        %s249 = ssub.s32 %s7, 2
        // Predicated region
        $region105: #{mem_update.1} parent=103 // pred_check
          %p250 = pneg %p62
        $region106: #{mem_update.1} parent=103 // pred_check_branch
          %252 = sbr.rel (%p250) target = $region108
        $region107: #{mem_update.1} parent=103 // pred_region
          %s253 = sand.u32 %s47, 1
          %s254 = sand.u32 %s47, 1
          %s255 = smul.addr %s254, 32
          %s256 = scalar_lea.vmem [#allocation3], %s255
        $region108: #{mem_update.1} parent=103 // pred_fallthru
          _
      $region104: #{mem_update.1} parent=5 // pred_fallthru
        _
    $region6: #{mem_update.1} parent=1 // loop_footer
      %s11 = sadd.s32 1, %s7
    $region7: #{mem_update.1} parent=1 // loop_footer_branch
      %6 = sbr.rel target = $region3
    $region8: #{mem_update.1} parent=1 // loop_exit
      _

</llo_original>
